<compile_context>
chip_gen: v5e
topology: v5e:2x2
jax: 0.10.0
libtpu: 0.0.40
codegen_flags: <defaults>
</compile_context>

<pallas_src>
import numpy as np
import jax
import jax.numpy as jnp
from jax.experimental import pallas as pl
from jax.experimental.pallas import tpu as pltpu


def _round_up(n, m):
    return -(-n // m) * m


def fuse_qkv_weights(wq, wk, wv):
    """Fuse [Wq | Wk | Wv] into one bf16 matrix, lane-padding each projection to a
    multiple of 128 so in-kernel q/k/v splits are lane-aligned.  Call ONCE (hoisted)."""
    d_in, d_out = wq.shape
    dp = _round_up(d_out, 128)
    w = jnp.zeros((d_in, 3 * dp), jnp.bfloat16)
    w = w.at[:, 0 * dp:0 * dp + d_out].set(wq.astype(jnp.bfloat16))
    w = w.at[:, 1 * dp:1 * dp + d_out].set(wk.astype(jnp.bfloat16))
    w = w.at[:, 2 * dp:2 * dp + d_out].set(wv.astype(jnp.bfloat16))
    return w


def _make_kernel(return_weights):
    def kernel(x_ref, wqkv_ref, *refs):
        # x_ref:    (Bb, T, d_in)  bf16, full sequence (block index = batch only)
        # wqkv_ref: (d_in, 3*dp)   bf16 fused, lane-padded weight
        # out_ref:  (Bb, tq, d_out)
        # attw_ref: (Bb, tq, T)                         [only if return_weights]
        # qkv_ref:  (Bb, T, 3*dp)  bf16 VMEM scratch: [q*scale | k | v]
        if return_weights:
            out_ref, attw_ref, qkv_ref = refs
        else:
            out_ref, qkv_ref = refs
            attw_ref = None

        Bb, T, d_in = x_ref.shape
        tq = out_ref.shape[1]
        d_out = out_ref.shape[2]
        dp = wqkv_ref.shape[1] // 3
        qi = pl.program_id(1)

        # --- fused QKV projection: once per batch block, cached in VMEM -----
        @pl.when(qi == 0)
        def _():
            x2d = x_ref[...].reshape(Bb * T, d_in)
            qkv = jax.lax.dot_general(
                x2d, wqkv_ref[...],
                dimension_numbers=(((1,), (0,)), ((), ())),
                preferred_element_type=jnp.float32)            # (Bb*T, 3*dp)
            qkv = qkv.reshape(Bb, T, 3 * dp)
            # Fold 1/sqrt(d_out) into q: O(T*d) instead of O(T^2) scaling;
            # -inf * positive const stays -inf for masked positions.
            scale = jnp.float32(1.0) / jnp.sqrt(jnp.float32(d_out))
            qkv_ref[:, :, 0:dp] = (qkv[..., 0:dp] * scale).astype(jnp.bfloat16)
            qkv_ref[:, :, dp:3 * dp] = qkv[..., dp:3 * dp].astype(jnp.bfloat16)

        # --- this query tile: scores over the full key range ----------------
        q0 = pl.multiple_of(qi * tq, tq)
        q_t = qkv_ref[:, pl.ds(q0, tq), 0:dp]                  # (Bb, tq, dp)
        k = qkv_ref[:, :, dp:2 * dp]                           # (Bb, T,  dp)
        v = qkv_ref[:, :, 2 * dp:3 * dp]                       # (Bb, T,  dp)

        scores = jnp.einsum("bqd,bkd->bqk", q_t, k,
                            preferred_element_type=jnp.float32)  # (Bb, tq, T)

        # Mask generated in-kernel: tril(ones, diagonal=1) != 0  <=>  j <= i+1.
        row = jax.lax.broadcasted_iota(jnp.int32, (tq, T), 0) + q0
        col = jax.lax.broadcasted_iota(jnp.int32, (tq, T), 1)
        scores = jnp.where((col <= row + 1)[None, :, :],
                           jnp.float32(-jnp.inf), scores)

        # Softmax (fully-masked rows yield NaN, exactly like torch).
        m = jnp.max(scores, axis=-1, keepdims=True)
        e = jnp.exp(scores - m)
        w = e * pl.reciprocal(jnp.sum(e, axis=-1, keepdims=True), approx=True)

        # TODO(synk): nn.Dropout treated as identity (eval mode); no in-kernel RNG.

        out = jnp.einsum("bqk,bkd->bqd", w.astype(jnp.bfloat16), v,
                         preferred_element_type=jnp.float32)     # (Bb, tq, dp)

        out_ref[...] = out[..., 0:d_out].astype(out_ref.dtype)
        if attw_ref is not None:
            attw_ref[...] = w.astype(attw_ref.dtype)

    return kernel


def _vmem_capacity_bytes():
    try:
        cap = getattr(pltpu.get_tpu_info(), "vmem_capacity_bytes", None)
        if cap:
            return int(cap)
    except Exception:
        pass
    return 64 * 1024 * 1024   # conservative fallback (v7x per-TensorCore)


def _estimate_vmem(Bb, tq, T, d_in, dp, d_out, out_isz, attw_isz, return_weights):
    """Rough per-grid-step VMEM footprint in bytes (double-buffered blocks)."""
    bf = 2
    x_blk = 2 * Bb * T * d_in * bf                  # input block (2 buffers)
    w_blk = 2 * d_in * 3 * dp * bf                  # fused weight (2 buffers)
    qkv_scr = Bb * T * 3 * dp * bf                  # cached q|k|v scratch (single)
    out_blk = 2 * Bb * tq * d_out * out_isz
    attw_blk = 2 * Bb * tq * T * attw_isz if return_weights else 0
    proj_tmp = Bb * T * 3 * dp * 4                  # f32 projection (qi == 0 only)
    tile_tmp = 3 * Bb * tq * T * 4 + 2 * Bb * tq * dp * 4   # scores / exp / w / out
    return x_blk + w_blk + qkv_scr + out_blk + attw_blk + max(proj_tmp, tile_tmp)


def _tq_options(T):
    opts = [t for t in range(8, min(T, 512) + 1, 8) if T % t == 0]
    return sorted(opts, reverse=True) if opts else [T]


def _pick_tiles(B, T, bytes_fn, vmem_budget):
    """Largest (Bb, tq) fitting the VMEM budget, preferring >= 2 grid steps
    (keeps v7x's two TensorCores busy and the DMA pipeline overlapped)."""
    tq_opts = _tq_options(T)
    bb_opts = sorted({b for b in range(1, B + 1) if B % b == 0}, reverse=True)
    fitting, fallback = [], None
    for Bb in bb_opts:
        for tq in tq_opts:
            need = bytes_fn(Bb, tq)
            if fallback is None or need < fallback[0]:
                fallback = (need, Bb, tq)
            if need <= vmem_budget:
                steps = (B // Bb) * (T // tq)
                fitting.append((steps >= 2, Bb * tq, Bb, tq))
    if fitting:
        fitting.sort(reverse=True)
        return fitting[0][2], fitting[0][3]
    return fallback[1], fallback[2]


def causal_attention_fused(x, wqkv, d_out, *, attw_dtype=None, return_weights=True):
    """x: (B, T, d_in); wqkv: fused/padded weight from fuse_qkv_weights (hoisted).

    Returns (att_output, att_weights) if return_weights else att_output."""
    B, T, d_in = x.shape
    assert wqkv.shape[0] == d_in and wqkv.shape[1] % 3 == 0
    dp = wqkv.shape[1] // 3
    out_dtype = x.dtype
    attw_dtype = out_dtype if attw_dtype is None else jnp.dtype(attw_dtype)

    vmem_budget = int(0.8 * _vmem_capacity_bytes())
    out_isz = jnp.dtype(out_dtype).itemsize
    attw_isz = jnp.dtype(attw_dtype).itemsize
    Bb, tq = _pick_tiles(
        B, T,
        lambda bb, t: _estimate_vmem(bb, t, T, d_in, dp, d_out,
                                     out_isz, attw_isz, return_weights),
        vmem_budget)
    grid = (B // Bb, T // tq)

    if return_weights:
        out_shape = (jax.ShapeDtypeStruct((B, T, d_out), out_dtype),
                     jax.ShapeDtypeStruct((B, T, T), attw_dtype))
        out_specs = (pl.BlockSpec((Bb, tq, d_out), lambda b, q: (b, q, 0)),
                     pl.BlockSpec((Bb, tq, T), lambda b, q: (b, q, 0)))
    else:
        out_shape = jax.ShapeDtypeStruct((B, T, d_out), out_dtype)
        out_specs = pl.BlockSpec((Bb, tq, d_out), lambda b, q: (b, q, 0))

    return pl.pallas_call(
        _make_kernel(return_weights),
        out_shape=out_shape,
        grid_spec=pltpu.PrefetchScalarGridSpec(
            num_scalar_prefetch=0,
            grid=grid,
            in_specs=[
                # Full-sequence x: block index depends only on the batch axis,
                # so it is only re-DMA'd when the batch block changes.
                pl.BlockSpec((Bb, T, d_in), lambda b, q: (b, 0, 0)),
                # Fused weight: constant block index -> fetched once.
                # TODO(synk): for very wide d_in/d_out, tile over 3*dp (or use
                # pipeline_mode=pl.Buffered(1)) so it is never fully resident.
                pl.BlockSpec((d_in, 3 * dp), lambda b, q: (0, 0)),
            ],
            out_specs=out_specs,
            scratch_shapes=[pltpu.VMEM((Bb, T, 3 * dp), jnp.bfloat16)],
        ),
        compiler_params=pltpu.CompilerParams(
            dimension_semantics=("parallel", "arbitrary"),
            vmem_limit_bytes=vmem_budget,
        ),
    )(x.astype(jnp.bfloat16), wqkv)


def causal_attention(x, wq, wk, wv, **kwargs):
    """Convenience wrapper (re-fuses weights per call; prefer fuse_qkv_weights once
    + causal_attention_fused in a loop)."""
    return causal_attention_fused(x, fuse_qkv_weights(wq, wk, wv),
                                  wq.shape[1], **kwargs)


def _reference(x, wq, wk, wv, mask):
    """Pure-JAX f32 reference mirroring the PyTorch forward exactly."""
    T = x.shape[1]
    q = x @ wq
    k = x @ wk
    v = x @ wv
    s = jnp.einsum("btd,bsd->bts", q, k)
    s = jnp.where(mask[None, :T, :T] != 0, -jnp.inf, s)
    scaled = s / jnp.sqrt(jnp.float32(k.shape[-1]))
    m = jnp.max(scaled, axis=-1, keepdims=True)
    e = jnp.exp(scaled - m)
    w = e / jnp.sum(e, axis=-1, keepdims=True)
    o = jnp.einsum("bts,bsd->btd", w, v)
    return o, w


if __name__ == "__main__":
    B, T, d_in, d_out, context_length = 2, 8, 32, 32, 16

    key = jax.random.PRNGKey(0)
    k1, k2, k3, k4 = jax.random.split(key, 4)
    x = jax.random.normal(k1, (B, T, d_in), dtype=jnp.float32)
    # Deterministic synthetic parameters (qkv_bias=False -> no bias terms).
    wq = jax.random.normal(k2, (d_in, d_out), dtype=jnp.float32) * 0.1
    wk = jax.random.normal(k3, (d_in, d_out), dtype=jnp.float32) * 0.1
    wv = jax.random.normal(k4, (d_in, d_out), dtype=jnp.float32) * 0.1
    # The module's buffer (reference only; the kernel generates it with iota).
    mask = jnp.tril(jnp.ones((context_length, context_length), jnp.float32), k=1)

    # Hoisted weight fusion (per review): fuse + lane-pad + bf16-cast once.
    wqkv = fuse_qkv_weights(wq, wk, wv)
    att_out, att_w = causal_attention_fused(x, wqkv, d_out)
    jax.block_until_ready((att_out, att_w))

    ref_out, ref_w = _reference(x, wq, wk, wv, mask)
    assert att_out.shape == (B, T, d_out) and att_w.shape == (B, T, T)
    # bf16 MXU inputs with f32 accumulation -> slightly loose tolerance.
    assert np.allclose(np.asarray(att_w), np.asarray(ref_w),
                       rtol=3e-2, atol=3e-2, equal_nan=True)
    assert np.allclose(np.asarray(att_out), np.asarray(ref_out),
                       rtol=3e-2, atol=3e-2, equal_nan=True)

    print("KERNEL_OK")
</pallas_src>

<mosaic_0001>
module attributes {stable_mosaic.version = 11 : i64} {
  func.func @kernel(%arg0: i32, %arg1: i32, %arg2: memref<1x8x32xbf16, #tpu.memory_space<vmem>>, %arg3: memref<32x384xbf16, #tpu.memory_space<vmem>>, %arg4: memref<1x8x32xf32, #tpu.memory_space<vmem>>, %arg5: memref<1x8x8xf32, #tpu.memory_space<vmem>>, %arg6: memref<1x8x384xbf16, #tpu.memory_space<vmem>>) attributes {dimension_semantics = [#tpu.dimension_semantics<parallel>, #tpu.dimension_semantics<arbitrary>], iteration_bounds = array<i64: 2, 1>, scalar_prefetch = 0 : i64, scratch_operands = 1 : i64, tpu.core_type = #tpu.core_type<tc>, window_params = [{transform_indices = @transform_0, window_bounds = array<i64: 1, 8, 32>}, {pipeline_mode = #tpu.pipeline_mode<synchronous>, transform_indices = @transform_1, window_bounds = array<i64: 32, 384>}, {transform_indices = @transform_2, window_bounds = array<i64: 1, 8, 32>}, {transform_indices = @transform_3, window_bounds = array<i64: 1, 8, 8>}]} {
    %c0_i32 = arith.constant 0 : i32
    %0 = arith.cmpi eq, %arg1, %c0_i32 : i32
    %1 = arith.extui %0 : i1 to i32
    %c0_i32_0 = arith.constant 0 : i32
    %2 = arith.cmpi ne, %1, %c0_i32_0 : i32
    scf.if %2 {
      %c0_16 = arith.constant 0 : index
      %c0_17 = arith.constant 0 : index
      %c0_18 = arith.constant 0 : index
      %35 = vector.load %arg2[%c0_16, %c0_17, %c0_18] : memref<1x8x32xbf16, #tpu.memory_space<vmem>>, vector<1x8x32xbf16>
      %36 = vector.shape_cast %35 : vector<1x8x32xbf16> to vector<8x32xbf16>
      %c0_19 = arith.constant 0 : index
      %c0_20 = arith.constant 0 : index
      %37 = vector.load %arg3[%c0_19, %c0_20] : memref<32x384xbf16, #tpu.memory_space<vmem>>, vector<32x384xbf16>
      %cst_21 = arith.constant dense<0.000000e+00> : vector<8x384xf32>
      %38 = tpu.matmul %36, %37, %cst_21 {dimension_numbers = #tpu.dot_dimension_numbers<[1], [0], [0], [1], [0, 0, 1, 1], [], []>} : vector<8x32xbf16>, vector<32x384xbf16>, vector<8x384xf32> -> vector<8x384xf32>
      %39 = vector.shape_cast %38 : vector<8x384xf32> to vector<1x8x384xf32>
      %cst_22 = arith.constant 3.200000e+01 : f32
      %40 = math.sqrt %cst_22 : f32
      %cst_23 = arith.constant 1.000000e+00 : f32
      %41 = arith.divf %cst_23, %40 : f32
      %42 = vector.extract_strided_slice %39 {offsets = [0, 0, 0], sizes = [1, 8, 128], strides = [1, 1, 1]} : vector<1x8x384xf32> to vector<1x8x128xf32>
      %43 = vector.broadcast %41 : f32 to vector<1x8x128xf32>
      %44 = arith.mulf %42, %43 : vector<1x8x128xf32>
      %45 = arith.truncf %44 : vector<1x8x128xf32> to vector<1x8x128xbf16>
      %c0_24 = arith.constant 0 : index
      %c0_25 = arith.constant 0 : index
      %c0_26 = arith.constant 0 : index
      %46 = vector.load %arg6[%c0_24, %c0_25, %c0_26] : memref<1x8x384xbf16, #tpu.memory_space<vmem>>, vector<1x8x128xbf16>
      tpu.vector_store %arg6[%c0_24, %c0_25, %c0_26], %45 {strides = array<i32>} : memref<1x8x384xbf16, #tpu.memory_space<vmem>>, vector<1x8x128xbf16>,
      %47 = vector.extract_strided_slice %39 {offsets = [0, 0, 128], sizes = [1, 8, 256], strides = [1, 1, 1]} : vector<1x8x384xf32> to vector<1x8x256xf32>
      %48 = arith.truncf %47 : vector<1x8x256xf32> to vector<1x8x256xbf16>
      %c0_27 = arith.constant 0 : index
      %c0_28 = arith.constant 0 : index
      %c128_29 = arith.constant 128 : index
      %49 = vector.load %arg6[%c0_27, %c0_28, %c128_29] : memref<1x8x384xbf16, #tpu.memory_space<vmem>>, vector<1x8x256xbf16>
      tpu.vector_store %arg6[%c0_27, %c0_28, %c128_29], %48 {strides = array<i32>} : memref<1x8x384xbf16, #tpu.memory_space<vmem>>, vector<1x8x256xbf16>,
    } else {
    }
    %c8_i32 = arith.constant 8 : i32
    %3 = arith.muli %arg1, %c8_i32 : i32
    %4 = tpu.assume_multiple %3, 8 : i32
    %c0 = arith.constant 0 : index
    %5 = arith.index_cast %4 : i32 to index
    %c0_1 = arith.constant 0 : index
    %6 = vector.load %arg6[%c0, %5, %c0_1] : memref<1x8x384xbf16, #tpu.memory_space<vmem>>, vector<1x8x128xbf16>
    %c0_2 = arith.constant 0 : index
    %c0_3 = arith.constant 0 : index
    %c128 = arith.constant 128 : index
    %7 = vector.load %arg6[%c0_2, %c0_3, %c128] : memref<1x8x384xbf16, #tpu.memory_space<vmem>>, vector<1x8x128xbf16>
    %c0_4 = arith.constant 0 : index
    %c0_5 = arith.constant 0 : index
    %c256 = arith.constant 256 : index
    %8 = vector.load %arg6[%c0_4, %c0_5, %c256] : memref<1x8x384xbf16, #tpu.memory_space<vmem>>, vector<1x8x128xbf16>
    "tpu.trace_start"() <{level = 10 : i32, message = "bqd,bkd->bqk"}> : () -> ()
    %cst = arith.constant dense<0.000000e+00> : vector<1x8x8xf32>
    %9 = tpu.matmul %6, %7, %cst {dimension_numbers = #tpu.dot_dimension_numbers<[2], [2], [1], [1], [0, 0, 0, 1, 1, 1], [0], [0]>} : vector<1x8x128xbf16>, vector<1x8x128xbf16>, vector<1x8x8xf32> -> vector<1x8x8xf32>
    "tpu.trace_stop"() : () -> ()
    %10 = tpu.iota {dimensions = array<i32: 0>} : vector<8x8xi32>
    %11 = vector.broadcast %4 : i32 to vector<8x8xi32>
    %12 = arith.addi %10, %11 : vector<8x8xi32>
    %13 = tpu.iota {dimensions = array<i32: 1>} : vector<8x8xi32>
    %c1_i32 = arith.constant 1 : i32
    %14 = vector.broadcast %c1_i32 : i32 to vector<8x8xi32>
    %15 = arith.addi %12, %14 : vector<8x8xi32>
    %16 = arith.cmpi sle, %13, %15 : vector<8x8xi32>
    %17 = vector.shape_cast %16 : vector<8x8xi1> to vector<1x8x8xi1>
    %cst_6 = arith.constant 0xFF800000 : f32
    %18 = vector.broadcast %cst_6 : f32 to vector<1x8x8xf32>
    %19 = arith.select %17, %18, %9 : vector<1x8x8xi1>, vector<1x8x8xf32>
    %cst_7 = arith.constant dense<0xFF800000> : vector<1x8xf32>
    %20 = vector.multi_reduction <maximumf>, %19, %cst_7 [2] : vector<1x8x8xf32> to vector<1x8xf32>
    %21 = vector.shape_cast %20 : vector<1x8xf32> to vector<1x8x1xf32>
    %22 = vector.broadcast %21 : vector<1x8x1xf32> to vector<1x8x8xf32>
    %23 = arith.subf %19, %22 : vector<1x8x8xf32>
    %24 = math.exp %23 : vector<1x8x8xf32>
    %cst_8 = arith.constant dense<0.000000e+00> : vector<1x8xf32>
    %25 = vector.multi_reduction <add>, %24, %cst_8 [2] : vector<1x8x8xf32> to vector<1x8xf32>
    %26 = vector.shape_cast %25 : vector<1x8xf32> to vector<1x8x1xf32>
    %27 = tpu.reciprocal %26 {approx = true} : vector<1x8x1xf32> -> vector<1x8x1xf32>
    %28 = vector.broadcast %27 : vector<1x8x1xf32> to vector<1x8x8xf32>
    %29 = arith.mulf %24, %28 : vector<1x8x8xf32>
    %30 = arith.truncf %29 : vector<1x8x8xf32> to vector<1x8x8xbf16>
    "tpu.trace_start"() <{level = 10 : i32, message = "bqk,bkd->bqd"}> : () -> ()
    %cst_9 = arith.constant dense<0.000000e+00> : vector<1x8x128xf32>
    %31 = tpu.matmul %30, %8, %cst_9 {dimension_numbers = #tpu.dot_dimension_numbers<[2], [1], [1], [2], [0, 0, 0, 1, 1, 2], [0], [0]>} : vector<1x8x8xbf16>, vector<1x8x128xbf16>, vector<1x8x128xf32> -> vector<1x8x128xf32>
    "tpu.trace_stop"() : () -> ()
    %32 = vector.extract_strided_slice %31 {offsets = [0, 0, 0], sizes = [1, 8, 32], strides = [1, 1, 1]} : vector<1x8x128xf32> to vector<1x8x32xf32>
    %c0_10 = arith.constant 0 : index
    %c0_11 = arith.constant 0 : index
    %c0_12 = arith.constant 0 : index
    %33 = vector.load %arg4[%c0_10, %c0_11, %c0_12] : memref<1x8x32xf32, #tpu.memory_space<vmem>>, vector<1x8x32xf32>
    tpu.vector_store %arg4[%c0_10, %c0_11, %c0_12], %32 {strides = array<i32>} : memref<1x8x32xf32, #tpu.memory_space<vmem>>, vector<1x8x32xf32>,
    %c0_13 = arith.constant 0 : index
    %c0_14 = arith.constant 0 : index
    %c0_15 = arith.constant 0 : index
    %34 = vector.load %arg5[%c0_13, %c0_14, %c0_15] : memref<1x8x8xf32, #tpu.memory_space<vmem>>, vector<1x8x8xf32>
    tpu.vector_store %arg5[%c0_13, %c0_14, %c0_15], %29 {strides = array<i32>} : memref<1x8x8xf32, #tpu.memory_space<vmem>>, vector<1x8x8xf32>,
    return
  }
  func.func @transform_0(%arg0: i32, %arg1: i32) -> (i32, i32, i32) {
    %c0_i32 = arith.constant 0 : i32
    %c0_i32_0 = arith.constant 0 : i32
    %c0_i32_1 = arith.constant 0 : i32
    return %arg0, %c0_i32, %c0_i32_0 : i32, i32, i32
  }
  func.func @transform_1(%arg0: i32, %arg1: i32) -> (i32, i32) {
    %c0_i32 = arith.constant 0 : i32
    %c0_i32_0 = arith.constant 0 : i32
    %c0_i32_1 = arith.constant 0 : i32
    return %c0_i32, %c0_i32_0 : i32, i32
  }
  func.func @transform_2(%arg0: i32, %arg1: i32) -> (i32, i32, i32) {
    %c0_i32 = arith.constant 0 : i32
    %c0_i32_0 = arith.constant 0 : i32
    return %arg0, %arg1, %c0_i32 : i32, i32, i32
  }
  func.func @transform_3(%arg0: i32, %arg1: i32) -> (i32, i32, i32) {
    %c0_i32 = arith.constant 0 : i32
    %c0_i32_0 = arith.constant 0 : i32
    return %arg0, %arg1, %c0_i32 : i32, i32, i32
  }
}

</mosaic_0001>

<llo_original>
// kernel: tpu_custom_call.1
$region0: #{tpu_custom_call.1}
  #allocation0 [shape = 'u32[]', space=smem, size = 0x4, offset = 0x4, fixed_abs, tag = 'smem constant byte address 0x4 - core index']
  #allocation1 [shape = 'u32[72,128]{1,0:T(1,128)}', space=vmem, size = 0x9000, scoped, tag = 'internal scratch']
  #allocation2 [shape = 'bf16[1,8,384]{2,1,0:T(8,128)(2,1)}', space=vmem, size = 0x1800, scoped, tag = 'scratch operand']
  %s0 = inlined_call_operand.hbm [shape: bf16[2,8,32], index: 0, kind: input, shape index: {}]
  %s1 = inlined_call_operand.hbm [shape: bf16[32,384], index: 1, kind: input, shape index: {}]
  %s2 = inlined_call_operand.hbm [shape: f32[2,8,32], index: 2, kind: output, shape index: {0}]
  %s3 = inlined_call_operand.hbm [shape: f32[2,8,8], index: 3, kind: output, shape index: {1}]
  %4 = xla_tuple %s2, %s3
  %s5 = sld [smem:[#allocation0]]
  $region61: #{tpu_custom_call.1} parent=0
    _
  %s7 = ssub.s32 1, %s5
  %s8 = scalar_select 0, %s7, %s5
  $region1: #{tpu_custom_call.1} parent=0
    #allocation3 [shape = 'u8[4096]{0}', space=vmem, size = 0x1000, scoped, tag = 'input window, operand 0']
    #allocation4 [shape = 's32[2]{0}', space=sflag, size = 0x8, scoped, tag = 'scoped memory for tpu_custom_call.1']
    #allocation5 [shape = 's32[2]{0}', space=sflag, size = 0x8, scoped, tag = 'scoped memory for tpu_custom_call.1']
    #allocation6 [shape = 'u8[24576]{0}', space=vmem, size = 0x6000, scoped, tag = 'input window, operand 1, single buffered']
    #allocation7 [shape = 's32[1]{0}', space=sflag, size = 0x4, scoped, tag = 'scoped memory for tpu_custom_call.1']
    #allocation8 [shape = 'u8[8192]{0}', space=vmem, size = 0x2000, scoped, tag = 'output window, operand 0']
    #allocation9 [shape = 'u8[8192]{0}', space=vmem, size = 0x2000, scoped, tag = 'output window, operand 1']
    #allocation10 [shape = 's32[2]{0}', space=sflag, size = 0x8, scoped, tag = 'scoped memory for tpu_custom_call.1']
    %9 = vsyncpa [#allocation4], 0
    %s10 = scalar_lea.sflag [#allocation4], 1
    %11 = vsyncpa %s10, 0
    %12 = vsyncpa [#allocation7], 0
    %13 = vsyncpa [#allocation5], 0
    %s14 = scalar_lea.sflag [#allocation5], 1
    %15 = vsyncpa %s14, 0
    %16 = vsyncpa [#allocation10], 0
    %s17 = scalar_lea.sflag [#allocation10], 1
    %18 = vsyncpa %s17, 0
    loop: start=0, step=1, limit=4
    $region2: #{tpu_custom_call.1} parent=1 // loop_pre_header
      _
    $region3: #{tpu_custom_call.1} parent=1 // loop_header
      %s20 = sphi 0, %s24
      %p21 = scmp.ge.s32.totalorder %s20, 4
      %s27 = sphi 0, %s39
      %s28 = sphi 0, %s35
      %s29 = sphi 0, %s27
      %s30 = sphi 0, %s28
      %s31 = sphi 0, %s29
      %s32 = sphi 0, %s30
      %s42 = sphi 0, %s44
      %s45 = sphi 0, %s42
      %s46 = sphi 0, %s45
      %s62 = sphi 0, %s46
      %s66 = sphi 0, %s66
      %s68 = sphi 0, %s66
      %s69 = sphi 0, %s68
      %s83 = sphi 0, %s69
      %s91 = sphi 0, %s93
      %s94 = sphi 0, %s91
      %s95 = sphi 0, %s94
      %s111 = sphi 0, %s95
      %s119 = sphi 0, %s121
      %s122 = sphi 0, %s119
      %s123 = sphi 0, %s122
      %s139 = sphi 0, %s123
    $region4: #{tpu_custom_call.1} parent=1 // loop_header_branch
      %23 = sbr.rel (%p21) target = $region8
    $region5: #{tpu_custom_call.1} parent=1 // loop_body
      %s25 = ssub.s32 %s20, 1
      %s26 = ssub.s32 %s20, 2
      %s33 = sadd.s32 1, %s28
      %p34 = scmp.ge.s32.totalorder %s33, 1
      %s35 = scalar_select %p34, 0, %s33
      %s36 = sadd.s32 1, %s27
      %s37 = scalar_select %p34, %s36, %s27
      %p38 = scmp.ge.s32.totalorder %s37, 2
      %s39 = scalar_select %p38, 0, %s37
      %s40 = ssub.s32 %s27, %s39
      %p41 = scmp.eq.s32.totalorder %s40, 0
      %s43 = sadd.s32 %s42, 1
      %s44 = scalar_select %p41, %s42, %s43
      %p47 = pneg %p41
      %p48 = scmp.eq.s32.totalorder %s20, 1
      %p49 = por %p47, %p48
      %p50 = scmp.ne.s32.totalorder %s42, %s45
      %p51 = scmp.eq.s32.totalorder %s20, 0
      %p52 = por %p50, %p51
      %p53 = scmp.ne.s32.totalorder %s42, %s45
      %p54 = scmp.eq.s32.totalorder %s25, 1
      %p55 = por %p53, %p54
      %p56 = scmp.ne.s32.totalorder %s45, %s46
      %p57 = scmp.eq.s32.totalorder %s25, 0
      %p58 = por %p56, %p57
      %p59 = scmp.ne.s32.totalorder %s45, %s46
      %p60 = scmp.eq.s32.totalorder %s26, 1
      %p61 = por %p59, %p60
      %p63 = scmp.ne.s32.totalorder %s46, %s62
      %p64 = scmp.eq.s32.totalorder %s26, 0
      %p65 = por %p63, %p64
      %s67 = sadd.s32 %s66, 1
      %p70 = scmp.eq.s32.totalorder %s20, 1
      %p71 = scmp.ne.s32.totalorder %s66, %s68
      %p72 = scmp.eq.s32.totalorder %s20, 0
      %p73 = por %p71, %p72
      %p74 = scmp.ne.s32.totalorder %s66, %s68
      %p75 = scmp.eq.s32.totalorder %s25, 1
      %p76 = por %p74, %p75
      %p77 = scmp.ne.s32.totalorder %s68, %s69
      %p78 = scmp.eq.s32.totalorder %s25, 0
      %p79 = por %p77, %p78
      %p80 = scmp.ne.s32.totalorder %s68, %s69
      %p81 = scmp.eq.s32.totalorder %s26, 1
      %p82 = por %p80, %p81
      %p84 = scmp.ne.s32.totalorder %s69, %s83
      %p85 = scmp.eq.s32.totalorder %s26, 0
      %p86 = por %p84, %p85
      %s87 = ssub.s32 %s27, %s39
      %s88 = ssub.s32 %s28, %s35
      %s89 = sor.u32 %s87, %s88
      %p90 = scmp.eq.s32.totalorder %s89, 0
      %s92 = sadd.s32 %s91, 1
      %s93 = scalar_select %p90, %s91, %s92
      %p96 = pneg %p90
      %p97 = scmp.eq.s32.totalorder %s20, 1
      %p98 = por %p96, %p97
      %p99 = scmp.ne.s32.totalorder %s91, %s94
      %p100 = scmp.eq.s32.totalorder %s20, 0
      %p101 = por %p99, %p100
      %p102 = scmp.ne.s32.totalorder %s91, %s94
      %p103 = scmp.eq.s32.totalorder %s25, 1
      %p104 = por %p102, %p103
      %p105 = scmp.ne.s32.totalorder %s94, %s95
      %p106 = scmp.eq.s32.totalorder %s25, 0
      %p107 = por %p105, %p106
      %p108 = scmp.ne.s32.totalorder %s94, %s95
      %p109 = scmp.eq.s32.totalorder %s26, 1
      %p110 = por %p108, %p109
      %p112 = scmp.ne.s32.totalorder %s95, %s111
      %p113 = scmp.eq.s32.totalorder %s26, 0
      %p114 = por %p112, %p113
      %s115 = ssub.s32 %s27, %s39
      %s116 = ssub.s32 %s28, %s35
      %s117 = sor.u32 %s115, %s116
      %p118 = scmp.eq.s32.totalorder %s117, 0
      %s120 = sadd.s32 %s119, 1
      %s121 = scalar_select %p118, %s119, %s120
      %p124 = pneg %p118
      %p125 = scmp.eq.s32.totalorder %s20, 1
      %p126 = por %p124, %p125
      %p127 = scmp.ne.s32.totalorder %s119, %s122
      %p128 = scmp.eq.s32.totalorder %s20, 0
      %p129 = por %p127, %p128
      %p130 = scmp.ne.s32.totalorder %s119, %s122
      %p131 = scmp.eq.s32.totalorder %s25, 1
      %p132 = por %p130, %p131
      %p133 = scmp.ne.s32.totalorder %s122, %s123
      %p134 = scmp.eq.s32.totalorder %s25, 0
      %p135 = por %p133, %p134
      %p136 = scmp.ne.s32.totalorder %s122, %s123
      %p137 = scmp.eq.s32.totalorder %s26, 1
      %p138 = por %p136, %p137
      %p140 = scmp.ne.s32.totalorder %s123, %s139
      %p141 = scmp.eq.s32.totalorder %s26, 0
      %p142 = por %p140, %p141
      %p143 = scmp.le.s32.totalorder 1, %s20
      %p144 = scmp.lt.s32.totalorder %s20, 3
      %p145 = pnand %p143, %p144
      %p146 = pneg %p145
      // Predicated region
      $region9: #{tpu_custom_call.1} parent=5 // pred_check
        _
      $region10: #{tpu_custom_call.1} parent=5 // pred_check_branch
        %148 = sbr.rel (%p145) target = $region12
      $region11: #{tpu_custom_call.1} parent=5 // pred_region
        %s149 = ssub.s32 %s20, 1
        // Predicated region
        $region13: #{tpu_custom_call.1} parent=11 // pred_check
          %p150 = pneg %p79
        $region14: #{tpu_custom_call.1} parent=11 // pred_check_branch
          %152 = sbr.rel (%p150) target = $region16
        $region15: #{tpu_custom_call.1} parent=11 // pred_region
          %154 = vsyncadd [#allocation7], 0
          %s155 = sshll.u32 %s1, 4
          %s156 = int_to_ptr.hbm [resolvable:$true] %s155
          %s157 = sshll.u32 [#allocation6], 4
          %s158 = int_to_ptr.vmem [resolvable:$true] %s157
          %163 = dma.hbm_to_vmem [thread:$0]  %s156, 768, %s158, [#allocation7], 192, 192, 12
        $region16: #{tpu_custom_call.1} parent=11 // pred_fallthru
          _
      $region12: #{tpu_custom_call.1} parent=5 // pred_fallthru
        _
      %p164 = scmp.lt.s32.totalorder %s20, 2
      // Predicated region
      $region17: #{tpu_custom_call.1} parent=5 // pred_check
        %p165 = pneg %p164
      $region18: #{tpu_custom_call.1} parent=5 // pred_check_branch
        %167 = sbr.rel (%p165) target = $region20
      $region19: #{tpu_custom_call.1} parent=5 // pred_region
        // Predicated region
        $region21: #{tpu_custom_call.1} parent=19 // pred_check
          %p168 = pneg %p52
        $region22: #{tpu_custom_call.1} parent=19 // pred_check_branch
          %170 = sbr.rel (%p168) target = $region24
        $region23: #{tpu_custom_call.1} parent=19 // pred_region
          %s171 = sand.u32 %s42, 1
          %s172 = scalar_lea.sflag [#allocation4], %s171
          %s173 = sand.u32 %s42, 1
          %s174 = smul.addr %s173, 4
          %s175 = scalar_lea.vmem [#allocation3], %s174
          %177 = vsyncadd %s172, 0
          %s178 = smul.addr %s27, 4
          %s179 = scalar_lea.hbm %s0, %s178
          %s181 = sshll.u32 %s179, 4
          %s182 = int_to_ptr.hbm [resolvable:$true] %s181
          %s183 = sshll.u32 %s175, 4
          %s184 = int_to_ptr.vmem [resolvable:$true] %s183
          %186 = dma.hbm_to_vmem [thread:$0]  %s182, 64, %s184, %s172
        $region24: #{tpu_custom_call.1} parent=19 // pred_fallthru
          _
      $region20: #{tpu_custom_call.1} parent=5 // pred_fallthru
        _
      %p187 = scmp.le.s32.totalorder 1, %s20
      %p188 = scmp.lt.s32.totalorder %s20, 3
      %p189 = pnand %p187, %p188
      %p190 = pneg %p189
      // Predicated region
      $region25: #{tpu_custom_call.1} parent=5 // pred_check
        _
      $region26: #{tpu_custom_call.1} parent=5 // pred_check_branch
        %192 = sbr.rel (%p189) target = $region28
      $region27: #{tpu_custom_call.1} parent=5 // pred_region
        %s193 = ssub.s32 %s20, 1
        %s194 = sand.u32 %s45, 1
        %s195 = scalar_lea.sflag [#allocation4], %s194
        %s196 = sand.u32 %s45, 1
        %s197 = smul.addr %s196, 4
        %s198 = scalar_lea.vmem [#allocation3], %s197
        // Predicated region
        $region29: #{tpu_custom_call.1} parent=27 // pred_check
          %p199 = pneg %p58
        $region30: #{tpu_custom_call.1} parent=27 // pred_check_branch
          %201 = sbr.rel (%p199) target = $region32
        $region31: #{tpu_custom_call.1} parent=27 // pred_region
          %203 = dma.done %s195, 64
        $region32: #{tpu_custom_call.1} parent=27 // pred_fallthru
          _
        // Predicated region
        $region33: #{tpu_custom_call.1} parent=27 // pred_check
          %p204 = pneg %p79
        $region34: #{tpu_custom_call.1} parent=27 // pred_check_branch
          %206 = sbr.rel (%p204) target = $region36
        $region35: #{tpu_custom_call.1} parent=27 // pred_region
          %208 = dma.done [#allocation7], 768
        $region36: #{tpu_custom_call.1} parent=27 // pred_fallthru
          _
        %s209 = sand.u32 %s45, 1
        %s210 = scalar_lea.sflag [#allocation4], %s209
        %s211 = sand.u32 %s45, 1
        %s212 = smul.addr %s211, 4
        %s213 = scalar_lea.vmem [#allocation3], %s212
        %p214 = pneg %p58
        %p215 = pneg %p55
        %p216 = pneg %p79
        %p217 = pneg %p76
        %p218 = pneg %p107
        %p219 = pneg %p104
        %s220 = sand.u32 %s94, 1
        %s221 = scalar_lea.sflag [#allocation5], %s220
        %s222 = sand.u32 %s94, 1
        %s223 = smul.addr %s222, 8
        %s224 = scalar_lea.vmem [#allocation8], %s223
        %p225 = pneg %p135
        %p226 = pneg %p132
        %s227 = sand.u32 %s122, 1
        %s228 = scalar_lea.sflag [#allocation10], %s227
        %s229 = sand.u32 %s122, 1
        %s230 = smul.addr %s229, 8
        %s231 = scalar_lea.vmem [#allocation9], %s230
        %p233 = scmp.eq.s32.totalorder %s30, 0
        // Predicated region
        $region37: #{tpu_custom_call.1} parent=27 // pred_check
          %p234 = pneg %p233
        $region38: #{tpu_custom_call.1} parent=27 // pred_check_branch
          %236 = sbr.rel (%p234) target = $region40
        $region39: #{tpu_custom_call.1} parent=27 // pred_region
          %v237 = vld [vmem:[%s198] sm:$0xf]
          %v238 = vld [vmem:[#allocation6] sm:$0xff]
          %v239 = vld [vmem:[#allocation6 + $0x8] sm:$0xf]
          %v240 = vld [vmem:[#allocation6 + $0xc] sm:$0xff]
          %v241 = vld [vmem:[#allocation6 + $0x14] sm:$0xf]
          %v242 = vld [vmem:[#allocation6 + $0x18] sm:$0xff]
          %v243 = vld [vmem:[#allocation6 + $0x20] sm:$0xf]
          %v244 = vld [vmem:[#allocation6 + $0x24] sm:$0xff]
          %v245 = vld [vmem:[#allocation6 + $0x2c] sm:$0xf]
          %v254 = vunpack.c.l.b16 %v238
          %v255 = vunpack.c.h.b16 %v238
          %v256 = vunpack.c.l.b16 %v239
          %v257 = vunpack.c.l.b16 %v240
          %v258 = vunpack.c.h.b16 %v240
          %v259 = vunpack.c.l.b16 %v241
          %v260 = vunpack.c.l.b16 %v242
          %v261 = vunpack.c.h.b16 %v242
          %v262 = vunpack.c.l.b16 %v243
          %v263 = vunpack.c.l.b16 %v244
          %v264 = vunpack.c.h.b16 %v244
          %v265 = vunpack.c.l.b16 %v245
          %v266 = vpack.c.b16 %v257, %v254
          %v267 = vpack.c.b16 %v258, %v255
          %v268 = vpack.c.b16 %v259, %v256
          %v269 = vpack.c.b16 %v263, %v260
          %v270 = vpack.c.b16 %v264, %v261
          %v271 = vpack.c.b16 %v265, %v262
          %vm278 = vcmask 261120
          %v280 = vsel %vm278, %v237, 0
          %282 = vmatpush.bf16.msra.mxu0 0
          %283 = vmatpush.bf16.msra.mxu0 0
          %284 = vmatpush.bf16.msra.mxu0 0
          %285 = vmatpush.bf16.msra.mxu0 0
          %286 = vmatpush.bf16.msra.mxu0 0
          %287 = vmatpush.bf16.msra.mxu0 0
          %288 = vmatpush.bf16.msra.mxu0 %v269
          %289 = vmatpush.bf16.msra.mxu0 %v266
          %290 = vmatmul.bf16.gmra.mxu0 %v280
          %v291 = vpop.f32.mrf.mxu0
          %v292 = vadd.f32 0.0, %v291
          %v293 = vpop.f32.mrf.mxu0
          %294 = vdwg.mxu0
          %295 = vmatpush.bf16.msra.mxu0 0
          %296 = vmatpush.bf16.msra.mxu0 0
          %297 = vmatpush.bf16.msra.mxu0 0
          %298 = vmatpush.bf16.msra.mxu0 0
          %299 = vmatpush.bf16.msra.mxu0 0
          %300 = vmatpush.bf16.msra.mxu0 0
          %301 = vmatpush.bf16.msra.mxu0 %v270
          %302 = vmatpush.bf16.msra.mxu0 %v267
          %303 = vmatmul.bf16.gmra.mxu0 %v280
          %v304 = vpop.f32.mrf.mxu0
          %v305 = vadd.f32 0.0, %v304
          %v306 = vpop.f32.mrf.mxu0
          %307 = vdwg.mxu0
          %308 = vmatpush.bf16.msra.mxu0 0
          %309 = vmatpush.bf16.msra.mxu0 0
          %310 = vmatpush.bf16.msra.mxu0 0
          %311 = vmatpush.bf16.msra.mxu0 0
          %312 = vmatpush.bf16.msra.mxu0 0
          %313 = vmatpush.bf16.msra.mxu0 0
          %314 = vmatpush.bf16.msra.mxu0 %v271
          %315 = vmatpush.bf16.msra.mxu0 %v268
          %316 = vmatmul.bf16.gmra.mxu0 %v280
          %v317 = vpop.f32.mrf.mxu0
          %v318 = vadd.f32 0.0, %v317
          %v319 = vpop.f32.mrf.mxu0
          %320 = vdwg.mxu0
          %v321 = vmul.f32 %v292, 0.17677669
          %v322 = vpack.c.bf16 %v321, %v321
          %323 = vst [vmem:[#allocation2] sm:$0xf] %v322
          %v324 = vpack.c.bf16 %v318, %v305
          %325 = vst [vmem:[#allocation2 + $0x4] sm:$0xff] %v324
        $region40: #{tpu_custom_call.1} parent=27 // pred_fallthru
          _
        %s326 = smul.u32 %s30, 8
        %s327 = sshra.s32 %s326, 3
        %s328 = sand.u32 %s326, 7
        %s329 = smul.u32 %s327, 3
        %s330 = smul.addr %s329, 4
        %s331 = scalar_lea.vmem [#allocation2], %s330
        %v332 = vld [vmem:[%s331] sm:$0xf]
        %v333 = vld [vmem:[#allocation2 + $0x4] sm:$0xf]
        %v334 = vld [vmem:[#allocation2 + $0x8] sm:$0xf]
        %335 = vmatpush.bf16.xpose.msra.mxu0 0
        %336 = vmatpush.bf16.xpose.msra.mxu0 0
        %337 = vmatpush.bf16.xpose.msra.mxu0 0
        %338 = vmatpush.bf16.xpose.msra.mxu0 0
        %339 = vmatpush.bf16.xpose.msra.mxu0 0
        %340 = vmatpush.bf16.xpose.msra.mxu0 0
        %341 = vmatpush.bf16.xpose.msra.mxu0 0
        %342 = vmatpush.bf16.xpose.msra.mxu0 %v333
        %343 = vmatmul.bf16.gmra.mxu0 %v332
        %v344 = vpop.f32.mrf.mxu0
        %v345 = vadd.f32 0.0, %v344
        %v346 = vpop.f32.mrf.mxu0
        %347 = vdwg.mxu0
        %v348 = vlaneseq
        %v349 = vshrl.u32 %v348, 7
        %v350 = vstv %s326
        %v351 = vadd.s32 %v349, %v350
        %v352 = vlaneseq
        %v353 = vand.u32 %v352, 127
        %v354 = vadd.s32 %v351, 1
        %vm355 = vcmp.le.s32.totalorder %v353, %v354
        %v356 = vsel %vm355, -inf, %v345
        %vm357 = vcmask 64512
        %v358 = vsel %vm357, %v356, -inf
        %359 = vmax.xlane.f32.xlu0 %v358
        %v360 = vpop.xlane.xlu0 %359
        %v361 = vsub.f32 %v356, %v360
        %v362 = vmul.f32 %v361, 1.442695
        %v363 = vpow.pop %v362
        %v364 = vsel %vm357, %v363, 0.0
        %365 = vadd.xlane.f32.xlu0 %v364
        %v366 = vpop.xlane.xlu0 %365
        %v367 = vrcp.pop %v366
        %v368 = vmul.f32 %v363, %v367
        %v369 = vpack.c.bf16 %v368, %v368
        %v371 = vsel %vm357, %v369, 0
        %vm373 = vcmask 1043456
        %v375 = vsel %vm373, %v334, 0
        %377 = vmatpush.bf16.msra.mxu0 0
        %378 = vmatpush.bf16.msra.mxu0 0
        %379 = vmatpush.bf16.msra.mxu0 0
        %380 = vmatpush.bf16.msra.mxu0 0
        %381 = vmatpush.bf16.msra.mxu0 0
        %382 = vmatpush.bf16.msra.mxu0 0
        %383 = vmatpush.bf16.msra.mxu0 0
        %384 = vmatpush.bf16.msra.mxu0 %v375
        %385 = vmatmul.bf16.gmra.mxu0 %v371
        %v386 = vpop.f32.mrf.mxu0
        %v387 = vadd.f32 0.0, %v386
        %v388 = vpop.f32.mrf.mxu0
        %389 = vdwg.mxu0
        %vm390 = vcmask 261120
        %391 = vst.msk [vmem:[%s224] sm:$0xff] %vm390, %v387
        %392 = vst.msk [vmem:[%s231] sm:$0xff] %vm357, %v368
        %s393 = sand.u32 %s94, 1
        %s394 = scalar_lea.sflag [#allocation5], %s393
        %s395 = sand.u32 %s94, 1
        %s396 = smul.addr %s395, 8
        %s397 = scalar_lea.vmem [#allocation8], %s396
        %s398 = sand.u32 %s122, 1
        %s399 = scalar_lea.sflag [#allocation10], %s398
        %s400 = sand.u32 %s122, 1
        %s401 = smul.addr %s400, 8
        %s402 = scalar_lea.vmem [#allocation9], %s401
        // Predicated region
        $region41: #{tpu_custom_call.1} parent=27 // pred_check
          %p403 = pneg %p104
        $region42: #{tpu_custom_call.1} parent=27 // pred_check_branch
          %405 = sbr.rel (%p403) target = $region44
        $region43: #{tpu_custom_call.1} parent=27 // pred_region
          %407 = vsyncadd %s394, 0
          %s408 = sadd.s32 %s30, %s29
          %s409 = smul.addr %s408, 8
          %s410 = scalar_lea.hbm %s2, %s409
          %s412 = sshll.u32 %s397, 4
          %s413 = int_to_ptr.vmem [resolvable:$true] %s412
          %s414 = sshll.u32 %s410, 4
          %s415 = int_to_ptr.hbm [resolvable:$true] %s414
          %417 = dma.vmem_to_hbm [thread:$0]  %s413, 128, %s415, %s394
        $region44: #{tpu_custom_call.1} parent=27 // pred_fallthru
          _
        // Predicated region
        $region45: #{tpu_custom_call.1} parent=27 // pred_check
          %p418 = pneg %p132
        $region46: #{tpu_custom_call.1} parent=27 // pred_check_branch
          %420 = sbr.rel (%p418) target = $region48
        $region47: #{tpu_custom_call.1} parent=27 // pred_region
          %422 = vsyncadd %s399, 0
          %s423 = sadd.s32 %s30, %s29
          %s424 = smul.addr %s423, 8
          %s425 = scalar_lea.hbm %s3, %s424
          %s427 = sshll.u32 %s402, 4
          %s428 = int_to_ptr.vmem [resolvable:$true] %s427
          %s429 = sshll.u32 %s425, 4
          %s430 = int_to_ptr.hbm [resolvable:$true] %s429
          %432 = dma.vmem_to_hbm [thread:$0]  %s428, 128, %s430, %s399
        $region48: #{tpu_custom_call.1} parent=27 // pred_fallthru
          _
      $region28: #{tpu_custom_call.1} parent=5 // pred_fallthru
        _
      %p433 = scmp.le.s32.totalorder 2, %s20
      // Predicated region
      $region49: #{tpu_custom_call.1} parent=5 // pred_check
        %p434 = pneg %p433
      $region50: #{tpu_custom_call.1} parent=5 // pred_check_branch
        %436 = sbr.rel (%p434) target = $region52
      $region51: #{tpu_custom_call.1} parent=5 // pred_region
        %s437 = ssub.s32 %s20, 2
        // Predicated region
        $region53: #{tpu_custom_call.1} parent=51 // pred_check
          %p438 = pneg %p110
        $region54: #{tpu_custom_call.1} parent=51 // pred_check_branch
          %440 = sbr.rel (%p438) target = $region56
        $region55: #{tpu_custom_call.1} parent=51 // pred_region
          %s441 = sand.u32 %s95, 1
          %s442 = scalar_lea.sflag [#allocation5], %s441
          %s443 = sand.u32 %s95, 1
          %s444 = smul.addr %s443, 8
          %s445 = scalar_lea.vmem [#allocation8], %s444
          %447 = dma.done %s442, 128
        $region56: #{tpu_custom_call.1} parent=51 // pred_fallthru
          _
        // Predicated region
        $region57: #{tpu_custom_call.1} parent=51 // pred_check
          %p448 = pneg %p138
        $region58: #{tpu_custom_call.1} parent=51 // pred_check_branch
          %450 = sbr.rel (%p448) target = $region60
        $region59: #{tpu_custom_call.1} parent=51 // pred_region
          %s451 = sand.u32 %s123, 1
          %s452 = scalar_lea.sflag [#allocation10], %s451
          %s453 = sand.u32 %s123, 1
          %s454 = smul.addr %s453, 8
          %s455 = scalar_lea.vmem [#allocation9], %s454
          %457 = dma.done %s452, 128
        $region60: #{tpu_custom_call.1} parent=51 // pred_fallthru
          _
      $region52: #{tpu_custom_call.1} parent=5 // pred_fallthru
        _
    $region6: #{tpu_custom_call.1} parent=1 // loop_footer
      %s24 = sadd.s32 1, %s20
    $region7: #{tpu_custom_call.1} parent=1 // loop_footer_branch
      %19 = sbr.rel target = $region3
    $region8: #{tpu_custom_call.1} parent=1 // loop_exit
      _
    %458 = vsyncpa [#allocation4], 1
    %s459 = scalar_lea.sflag [#allocation4], 1
    %460 = vsyncpa %s459, 1
    %461 = vsyncpa [#allocation7], 1
    %462 = vsyncpa [#allocation5], 1
    %s463 = scalar_lea.sflag [#allocation5], 1
    %464 = vsyncpa %s463, 1
    %465 = vsyncpa [#allocation10], 1
    %s466 = scalar_lea.sflag [#allocation10], 1
    %467 = vsyncpa %s466, 1

</llo_original>
